<compile_context>
chip_gen: v7x
topology: tpu7x:2x2x1
jax: 0.10.0
libtpu: 0.0.40
codegen_flags: <defaults>
</compile_context>

<pallas_src>
import functools

import jax
import jax.numpy as jnp
from jax.experimental import pallas as pl
from jax.experimental.pallas import tpu as pltpu

_LANE = 128


def _round_up(n, m):
    return ((n + m - 1) // m) * m


# -----------------------------------------------------------------------------
# Kernel: grid=(L,) — one LSTM layer per grid step, FC head on the last step.
# -----------------------------------------------------------------------------
def _make_kernel(layer_dim, hidden_dim, d_pad, k_pad):
    H, L = hidden_dim, layer_dim

    def kernel(x_ref, state_ref, w_ref, fc_ref, state_out_ref, y_ref, xh_ref):
        l = pl.program_id(0)

        # Initialize the fused [input | h_prev | 1 | 0-pad] vector once (layer 0).
        @pl.when(l == 0)
        def _():
            lane = jax.lax.broadcasted_iota(jnp.int32, (1, k_pad), 1)
            xh_ref[...] = (lane == d_pad + H).astype(jnp.float32)  # bias lane = 1.0
            xh_ref[:, :d_pad] = x_ref[...]                         # model input (padded)

        # This layer's incoming state: sublane-row indexing of the packed (2L, H) state.
        h_prev = state_ref[pl.ds(l, 1), :]        # (1, H)
        c_prev = state_ref[pl.ds(L + l, 1), :]    # (1, H)
        xh_ref[:, d_pad:d_pad + H] = h_prev

        # ONE fused MXU pass: gates = [x|h|1] @ [W_ih; W_hh; b], gate cols (i, f, o, g).
        gates = jnp.dot(xh_ref[...].astype(jnp.bfloat16), w_ref[0],
                        preferred_element_type=jnp.float32)        # (1, 4H) f32

        ifo = jax.nn.sigmoid(gates[:, :3 * H])    # one sigmoid over 3H lanes
        g_g = jnp.tanh(gates[:, 3 * H:])          # one tanh over H lanes
        i_g = ifo[:, :H]
        f_g = ifo[:, H:2 * H]
        o_g = ifo[:, 2 * H:3 * H]

        c_new = f_g * c_prev + i_g * g_g
        h_new = o_g * jnp.tanh(c_new)

        state_out_ref[pl.ds(l, 1), :] = h_new
        state_out_ref[pl.ds(L + l, 1), :] = c_new
        xh_ref[:, :H] = h_new                     # becomes the next layer's input

        # FC head on the final hidden state, reusing the same xh vector: the FC slab has
        # zero rows everywhere except rows [0, H) (fc_w^T) and the bias row.
        @pl.when(l == L - 1)
        def _():
            y_ref[...] = jnp.dot(xh_ref[...].astype(jnp.bfloat16), fc_ref[...],
                                 preferred_element_type=jnp.float32)

    return kernel


def fused_lstm_step(x_pad, state, w_slab, fc_slab):
    """x_pad: (1, D_pad) f32, state: (2L, H) f32 packed [h_0..h_{L-1}, c_0..c_{L-1}],
    w_slab: (L, K_pad, 4H) bf16, fc_slab: (K_pad, O_pad) bf16."""
    L, k_pad, four_h = w_slab.shape
    H = four_h // 4
    d_pad = x_pad.shape[-1]
    odim_pad = fc_slab.shape[-1]

    grid_spec = pltpu.PrefetchScalarGridSpec(
        num_scalar_prefetch=0,
        grid=(L,),
        in_specs=[
            pl.BlockSpec((1, d_pad), lambda l: (0, 0)),              # x (resident)
            pl.BlockSpec((2 * L, H), lambda l: (0, 0)),              # packed state (resident)
            pl.BlockSpec((1, k_pad, four_h), lambda l: (l, 0, 0)),   # per-layer weights (pipelined)
            pl.BlockSpec((k_pad, odim_pad), lambda l: (0, 0)),       # fc slab (resident)
        ],
        out_specs=(
            pl.BlockSpec((2 * L, H), lambda l: (0, 0)),              # new packed state
            pl.BlockSpec((1, odim_pad), lambda l: (0, 0)),           # fc output (lane-padded)
        ),
        scratch_shapes=[pltpu.VMEM((1, k_pad), jnp.float32)],        # xh carry across layers
    )
    return pl.pallas_call(
        _make_kernel(L, H, d_pad, k_pad),
        out_shape=(
            jax.ShapeDtypeStruct((2 * L, H), jnp.float32),
            jax.ShapeDtypeStruct((1, odim_pad), jnp.float32),
        ),
        grid_spec=grid_spec,
        input_output_aliases={1: 0},  # packed state updated in place
        compiler_params=pltpu.CompilerParams(
            dimension_semantics=("arbitrary",),   # layers are sequential
            vmem_limit_bytes=32 * 1024 * 1024,
        ),
    )(x_pad, state, w_slab, fc_slab)


# -----------------------------------------------------------------------------
# Parameter init (PyTorch shapes / init) and kernel-side packing.
# -----------------------------------------------------------------------------
def init_params(key, input_dim, hidden_dim, layer_dim, output_dim):
    H = hidden_dim
    k = 1.0 / (H ** 0.5)
    lstm = []
    for layer in range(layer_dim):
        d_in = input_dim if layer == 0 else H
        key, k1, k2, k3, k4 = jax.random.split(key, 5)
        w_ih = jax.random.uniform(k1, (4 * H, d_in), jnp.float32, -k, k)
        w_hh = jax.random.uniform(k2, (4 * H, H), jnp.float32, -k, k)
        b_ih = jax.random.uniform(k3, (4 * H,), jnp.float32, -k, k)
        b_hh = jax.random.uniform(k4, (4 * H,), jnp.float32, -k, k)
        lstm.append((w_ih, w_hh, b_ih, b_hh))
    key, k1, k2 = jax.random.split(key, 3)
    fc_w = jax.random.uniform(k1, (output_dim, H), jnp.float32, -k, k)
    fc_b = jax.random.uniform(k2, (output_dim,), jnp.float32, -k, k)
    return {"lstm": lstm, "fc_w": fc_w, "fc_b": fc_b,
            "input_dim": input_dim, "hidden_dim": H,
            "layer_dim": layer_dim, "output_dim": output_dim}


def pack_params(params):
    """Pack PyTorch-layout params into the two bf16 weight slabs the kernel consumes."""
    H = params["hidden_dim"]
    L = params["layer_dim"]
    input_dim = params["input_dim"]
    output_dim = params["output_dim"]

    d_pad = max(input_dim, H)                    # shared layer-input lane width
    k_pad = _round_up(d_pad + H + 1, 16)         # [input | h | bias-1 | pad], bf16-friendly rows
    odim_pad = _round_up(output_dim, _LANE)      # lane-dense FC output slab

    def reorder(w):  # gate rows/entries (i, f, g, o) -> (i, f, o, g)
        return jnp.concatenate(
            [w[0:H], w[H:2 * H], w[3 * H:4 * H], w[2 * H:3 * H]], axis=0)

    slabs = []
    for (w_ih, w_hh, b_ih, b_hh) in params["lstm"]:
        d_in = w_ih.shape[1]
        slab = jnp.zeros((k_pad, 4 * H), jnp.float32)
        slab = slab.at[:d_in].set(reorder(w_ih).T)                 # input weights
        slab = slab.at[d_pad:d_pad + H].set(reorder(w_hh).T)       # recurrent weights
        slab = slab.at[d_pad + H].set(reorder(b_ih + b_hh))        # fused bias row
        slabs.append(slab)
    w_slab = jnp.stack(slabs).astype(jnp.bfloat16)                 # (L, K_pad, 4H)

    fc_slab = jnp.zeros((k_pad, odim_pad), jnp.float32)
    fc_slab = fc_slab.at[:H, :output_dim].set(params["fc_w"].T)    # acts on xh lanes [0, H)
    fc_slab = fc_slab.at[d_pad + H, :output_dim].set(params["fc_b"])  # bias row (xh lane == 1)
    fc_slab = fc_slab.astype(jnp.bfloat16)

    return {"w_slab": w_slab, "fc_slab": fc_slab, "d_pad": d_pad,
            "input_dim": input_dim, "hidden_dim": H,
            "layer_dim": L, "output_dim": output_dim}


# -----------------------------------------------------------------------------
# Forward (mirrors LSTMModel.forward: one time step, last hidden -> fc -> squeeze).
# -----------------------------------------------------------------------------
def lstm_model_forward(packed, x, h0, c0):
    """x: (input_dim,) -> out: (output_dim,), plus updated (hn, cn) like the module's h0/c0."""
    L = packed["layer_dim"]
    H = packed["hidden_dim"]
    d_pad = packed["d_pad"]
    input_dim = packed["input_dim"]
    odim = packed["output_dim"]

    x_pad = jnp.zeros((1, d_pad), jnp.float32).at[0, :input_dim].set(x.astype(jnp.float32))
    state = jnp.concatenate([h0.reshape(L, H), c0.reshape(L, H)], axis=0)  # (2L, H)

    state_new, y_pad = fused_lstm_step(x_pad, state, packed["w_slab"], packed["fc_slab"])

    hn = state_new[:L].reshape(L, 1, H)
    cn = state_new[L:].reshape(L, 1, H)
    return y_pad[0, :odim], (hn, cn)


# Pure-JAX f32 reference on the RAW (unpacked) params — validates packing + kernel math.
def _reference_forward(params, x, h0, c0):
    H = params["hidden_dim"]
    L = params["layer_dim"]
    inp = x.reshape(1, -1).astype(jnp.float32)
    hs, cs = [], []
    for l in range(L):
        w_ih, w_hh, b_ih, b_hh = params["lstm"][l]
        gates = inp @ w_ih.T + h0[l] @ w_hh.T + b_ih + b_hh  # PyTorch gate order (i, f, g, o)
        i_g = jax.nn.sigmoid(gates[:, 0 * H:1 * H])
        f_g = jax.nn.sigmoid(gates[:, 1 * H:2 * H])
        g_g = jnp.tanh(gates[:, 2 * H:3 * H])
        o_g = jax.nn.sigmoid(gates[:, 3 * H:4 * H])
        c = f_g * c0[l] + i_g * g_g
        h = o_g * jnp.tanh(c)
        hs.append(h)
        cs.append(c)
        inp = h
    out = (inp @ params["fc_w"].T + params["fc_b"])[0]
    return out, (jnp.stack(hs), jnp.stack(cs))


if __name__ == "__main__":
    input_dim, hidden_dim, layer_dim, output_dim = 16, 32, 2, 4
    dropout_prob = 0.2  # training-only; unused in this inference path

    key = jax.random.PRNGKey(0)
    pkey, xkey1, xkey2 = jax.random.split(key, 3)
    params = init_params(pkey, input_dim, hidden_dim, layer_dim, output_dim)
    packed = pack_params(params)

    x1 = jax.random.normal(xkey1, (input_dim,), jnp.float32)
    x2 = jax.random.normal(xkey2, (input_dim,), jnp.float32)
    h0 = jnp.zeros((layer_dim, 1, hidden_dim), jnp.float32)
    c0 = jnp.zeros((layer_dim, 1, hidden_dim), jnp.float32)

    fwd = jax.jit(functools.partial(lstm_model_forward, packed))

    # Two stateful steps (mirrors the module updating self.h0 / self.c0 each call).
    out1, (h1, c1) = fwd(x1, h0, c0)
    out2, (h2, c2) = fwd(x2, h1, c1)
    jax.block_until_ready((out1, out2, h2, c2))

    assert out1.shape == (output_dim,) and out2.shape == (output_dim,)
    assert h2.shape == (layer_dim, 1, hidden_dim)
    assert c2.shape == (layer_dim, 1, hidden_dim)

    # Numerical sanity check vs f32 plain-JAX math (bf16 weights -> loose tolerance).
    ro1, (rh1, rc1) = _reference_forward(params, x1, h0, c0)
    ro2, (rh2, rc2) = _reference_forward(params, x2, rh1, rc1)
    tol = dict(atol=3e-2, rtol=3e-2)
    assert jnp.allclose(out1, ro1, **tol)
    assert jnp.allclose(h1, rh1, **tol)
    assert jnp.allclose(c1, rc1, **tol)
    assert jnp.allclose(out2, ro2, **tol)
    assert jnp.allclose(h2, rh2, **tol)
    assert jnp.allclose(c2, rc2, **tol)

    print("KERNEL_OK")
</pallas_src>

<mosaic_0001>
module attributes {stable_mosaic.version = 11 : i64} {
  func.func @kernel(%arg0: i32, %arg1: memref<1x32xf32, #tpu.memory_space<vmem>>, %arg2: memref<4x32xf32, #tpu.memory_space<vmem>>, %arg3: memref<1x80x128xbf16, #tpu.memory_space<vmem>>, %arg4: memref<80x128xbf16, #tpu.memory_space<vmem>>, %arg5: memref<4x32xf32, #tpu.memory_space<vmem>>, %arg6: memref<1x128xf32, #tpu.memory_space<vmem>>, %arg7: memref<1x80xf32, #tpu.memory_space<vmem>>) attributes {dimension_semantics = [#tpu.dimension_semantics<arbitrary>], iteration_bounds = array<i64: 2>, scalar_prefetch = 0 : i64, scratch_operands = 1 : i64, tpu.core_type = #tpu.core_type<tc>, window_params = [{pipeline_mode = #tpu.pipeline_mode<synchronous>, transform_indices = @transform_0, window_bounds = array<i64: 1, 32>}, {pipeline_mode = #tpu.pipeline_mode<synchronous>, transform_indices = @transform_1, window_bounds = array<i64: 4, 32>}, {transform_indices = @transform_2, window_bounds = array<i64: 1, 80, 128>}, {pipeline_mode = #tpu.pipeline_mode<synchronous>, transform_indices = @transform_3, window_bounds = array<i64: 80, 128>}, {pipeline_mode = #tpu.pipeline_mode<synchronous>, transform_indices = @transform_4, window_bounds = array<i64: 4, 32>}, {pipeline_mode = #tpu.pipeline_mode<synchronous>, transform_indices = @transform_5, window_bounds = array<i64: 1, 128>}]} {
    %c0_i32 = arith.constant 0 : i32
    %0 = arith.cmpi eq, %arg0, %c0_i32 : i32
    %1 = arith.extui %0 : i1 to i32
    %c0_i32_0 = arith.constant 0 : i32
    %2 = arith.cmpi ne, %1, %c0_i32_0 : i32
    scf.if %2 {
      %39 = tpu.iota {dimensions = array<i32: 1>} : vector<1x80xi32>
      %c64_i32 = arith.constant 64 : i32
      %40 = vector.broadcast %c64_i32 : i32 to vector<1x80xi32>
      %41 = arith.cmpi eq, %39, %40 : vector<1x80xi32>
      %42 = arith.extui %41 : vector<1x80xi1> to vector<1x80xi32>
      %43 = arith.sitofp %42 : vector<1x80xi32> to vector<1x80xf32>
      %c0_15 = arith.constant 0 : index
      %c0_16 = arith.constant 0 : index
      %44 = vector.load %arg7[%c0_15, %c0_16] : memref<1x80xf32, #tpu.memory_space<vmem>>, vector<1x80xf32>
      tpu.vector_store %arg7[%c0_15, %c0_16], %43 {strides = array<i32>} : memref<1x80xf32, #tpu.memory_space<vmem>>, vector<1x80xf32>,
      %c0_17 = arith.constant 0 : index
      %c0_18 = arith.constant 0 : index
      %45 = vector.load %arg1[%c0_17, %c0_18] : memref<1x32xf32, #tpu.memory_space<vmem>>, vector<1x32xf32>
      %c0_19 = arith.constant 0 : index
      %c0_20 = arith.constant 0 : index
      %46 = vector.load %arg7[%c0_19, %c0_20] : memref<1x80xf32, #tpu.memory_space<vmem>>, vector<1x32xf32>
      tpu.vector_store %arg7[%c0_19, %c0_20], %45 {strides = array<i32>} : memref<1x80xf32, #tpu.memory_space<vmem>>, vector<1x32xf32>,
    } else {
    }
    %3 = arith.index_cast %arg0 : i32 to index
    %c0 = arith.constant 0 : index
    %4 = vector.load %arg2[%3, %c0] : memref<4x32xf32, #tpu.memory_space<vmem>>, vector<1x32xf32>
    %c2_i32 = arith.constant 2 : i32
    %5 = arith.addi %c2_i32, %arg0 : i32
    %6 = arith.index_cast %5 : i32 to index
    %c0_1 = arith.constant 0 : index
    %7 = vector.load %arg2[%6, %c0_1] : memref<4x32xf32, #tpu.memory_space<vmem>>, vector<1x32xf32>
    %c0_2 = arith.constant 0 : index
    %c32 = arith.constant 32 : index
    %8 = vector.load %arg7[%c0_2, %c32] : memref<1x80xf32, #tpu.memory_space<vmem>>, vector<1x32xf32>
    tpu.vector_store %arg7[%c0_2, %c32], %4 {strides = array<i32>} : memref<1x80xf32, #tpu.memory_space<vmem>>, vector<1x32xf32>,
    %c0_3 = arith.constant 0 : index
    %c0_4 = arith.constant 0 : index
    %9 = vector.load %arg7[%c0_3, %c0_4] : memref<1x80xf32, #tpu.memory_space<vmem>>, vector<1x80xf32>
    %10 = arith.truncf %9 : vector<1x80xf32> to vector<1x80xbf16>
    %c0_5 = arith.constant 0 : index
    %c0_6 = arith.constant 0 : index
    %c0_7 = arith.constant 0 : index
    %11 = vector.load %arg3[%c0_5, %c0_6, %c0_7] : memref<1x80x128xbf16, #tpu.memory_space<vmem>>, vector<1x80x128xbf16>
    %12 = vector.shape_cast %11 : vector<1x80x128xbf16> to vector<80x128xbf16>
    %cst = arith.constant dense<0.000000e+00> : vector<1x128xf32>
    %13 = tpu.matmul %10, %12, %cst {dimension_numbers = #tpu.dot_dimension_numbers<[1], [0], [0], [1], [0, 0, 1, 1], [], []>} : vector<1x80xbf16>, vector<80x128xbf16>, vector<1x128xf32> -> vector<1x128xf32>
    %14 = vector.extract_strided_slice %13 {offsets = [0, 0], sizes = [1, 96], strides = [1, 1]} : vector<1x128xf32> to vector<1x96xf32>
    %15 = arith.negf %14 : vector<1x96xf32>
    %16 = math.exp %15 : vector<1x96xf32>
    %cst_8 = arith.constant 1.000000e+00 : f32
    %17 = vector.broadcast %cst_8 : f32 to vector<1x96xf32>
    %18 = arith.addf %17, %16 : vector<1x96xf32>
    %19 = arith.divf %17, %18 : vector<1x96xf32>
    %20 = vector.extract_strided_slice %13 {offsets = [0, 96], sizes = [1, 32], strides = [1, 1]} : vector<1x128xf32> to vector<1x32xf32>
    %21 = math.tanh %20 : vector<1x32xf32>
    %22 = vector.extract_strided_slice %19 {offsets = [0, 0], sizes = [1, 32], strides = [1, 1]} : vector<1x96xf32> to vector<1x32xf32>
    %23 = vector.extract_strided_slice %19 {offsets = [0, 32], sizes = [1, 32], strides = [1, 1]} : vector<1x96xf32> to vector<1x32xf32>
    %24 = vector.extract_strided_slice %19 {offsets = [0, 64], sizes = [1, 32], strides = [1, 1]} : vector<1x96xf32> to vector<1x32xf32>
    %25 = arith.mulf %23, %7 : vector<1x32xf32>
    %26 = arith.mulf %22, %21 : vector<1x32xf32>
    %27 = arith.addf %25, %26 : vector<1x32xf32>
    %28 = math.tanh %27 : vector<1x32xf32>
    %29 = arith.mulf %24, %28 : vector<1x32xf32>
    %30 = arith.index_cast %arg0 : i32 to index
    %c0_9 = arith.constant 0 : index
    %31 = vector.load %arg5[%30, %c0_9] : memref<4x32xf32, #tpu.memory_space<vmem>>, vector<1x32xf32>
    tpu.vector_store %arg5[%30, %c0_9], %29 {strides = array<i32>} : memref<4x32xf32, #tpu.memory_space<vmem>>, vector<1x32xf32>,
    %c2_i32_10 = arith.constant 2 : i32
    %32 = arith.addi %c2_i32_10, %arg0 : i32
    %33 = arith.index_cast %32 : i32 to index
    %c0_11 = arith.constant 0 : index
    %34 = vector.load %arg5[%33, %c0_11] : memref<4x32xf32, #tpu.memory_space<vmem>>, vector<1x32xf32>
    tpu.vector_store %arg5[%33, %c0_11], %27 {strides = array<i32>} : memref<4x32xf32, #tpu.memory_space<vmem>>, vector<1x32xf32>,
    %c0_12 = arith.constant 0 : index
    %c0_13 = arith.constant 0 : index
    %35 = vector.load %arg7[%c0_12, %c0_13] : memref<1x80xf32, #tpu.memory_space<vmem>>, vector<1x32xf32>
    tpu.vector_store %arg7[%c0_12, %c0_13], %29 {strides = array<i32>} : memref<1x80xf32, #tpu.memory_space<vmem>>, vector<1x32xf32>,
    %c1_i32 = arith.constant 1 : i32
    %36 = arith.cmpi eq, %arg0, %c1_i32 : i32
    %37 = arith.extui %36 : i1 to i32
    %c0_i32_14 = arith.constant 0 : i32
    %38 = arith.cmpi ne, %37, %c0_i32_14 : i32
    scf.if %38 {
      %c0_15 = arith.constant 0 : index
      %c0_16 = arith.constant 0 : index
      %39 = vector.load %arg7[%c0_15, %c0_16] : memref<1x80xf32, #tpu.memory_space<vmem>>, vector<1x80xf32>
      %40 = arith.truncf %39 : vector<1x80xf32> to vector<1x80xbf16>
      %c0_17 = arith.constant 0 : index
      %c0_18 = arith.constant 0 : index
      %41 = vector.load %arg4[%c0_17, %c0_18] : memref<80x128xbf16, #tpu.memory_space<vmem>>, vector<80x128xbf16>
      %cst_19 = arith.constant dense<0.000000e+00> : vector<1x128xf32>
      %42 = tpu.matmul %40, %41, %cst_19 {dimension_numbers = #tpu.dot_dimension_numbers<[1], [0], [0], [1], [0, 0, 1, 1], [], []>} : vector<1x80xbf16>, vector<80x128xbf16>, vector<1x128xf32> -> vector<1x128xf32>
      %c0_20 = arith.constant 0 : index
      %c0_21 = arith.constant 0 : index
      %43 = vector.load %arg6[%c0_20, %c0_21] : memref<1x128xf32, #tpu.memory_space<vmem>>, vector<1x128xf32>
      tpu.vector_store %arg6[%c0_20, %c0_21], %42 {strides = array<i32>} : memref<1x128xf32, #tpu.memory_space<vmem>>, vector<1x128xf32>,
    } else {
    }
    return
  }
  func.func @transform_0(%arg0: i32) -> (i32, i32) {
    %c0_i32 = arith.constant 0 : i32
    %c0_i32_0 = arith.constant 0 : i32
    %c0_i32_1 = arith.constant 0 : i32
    return %c0_i32, %c0_i32_0 : i32, i32
  }
  func.func @transform_1(%arg0: i32) -> (i32, i32) {
    %c0_i32 = arith.constant 0 : i32
    %c0_i32_0 = arith.constant 0 : i32
    %c0_i32_1 = arith.constant 0 : i32
    return %c0_i32, %c0_i32_0 : i32, i32
  }
  func.func @transform_2(%arg0: i32) -> (i32, i32, i32) {
    %c0_i32 = arith.constant 0 : i32
    %c0_i32_0 = arith.constant 0 : i32
    %c0_i32_1 = arith.constant 0 : i32
    return %arg0, %c0_i32, %c0_i32_0 : i32, i32, i32
  }
  func.func @transform_3(%arg0: i32) -> (i32, i32) {
    %c0_i32 = arith.constant 0 : i32
    %c0_i32_0 = arith.constant 0 : i32
    %c0_i32_1 = arith.constant 0 : i32
    return %c0_i32, %c0_i32_0 : i32, i32
  }
  func.func @transform_4(%arg0: i32) -> (i32, i32) {
    %c0_i32 = arith.constant 0 : i32
    %c0_i32_0 = arith.constant 0 : i32
    %c0_i32_1 = arith.constant 0 : i32
    return %c0_i32, %c0_i32_0 : i32, i32
  }
  func.func @transform_5(%arg0: i32) -> (i32, i32) {
    %c0_i32 = arith.constant 0 : i32
    %c0_i32_0 = arith.constant 0 : i32
    %c0_i32_1 = arith.constant 0 : i32
    return %c0_i32, %c0_i32_0 : i32, i32
  }
}

</mosaic_0001>

<llo_original>
// kernel: lstm_model_forward.1
$region0: #{lstm_model_forward.1}
  #allocation0 [shape = 'u32[]', space=smem, size = 0x4, offset = 0x4, fixed_abs, tag = 'smem constant byte address 0x4 - core index']
  #allocation1 [shape = 'u32[144,128]{1,0:T(1,128)}', space=vmem, size = 0x12000, scoped, tag = 'internal scratch']
  #allocation2 [shape = 'f32[1,80]{1,0:T(1,128)}', space=vmem, size = 0x200, scoped, tag = 'scratch operand']
  %s0 = inlined_call_operand.vmem [shape: f32[1,32], index: 0, kind: input, shape index: {}]
  %s1 = inlined_call_operand.vmem [shape: f32[4,32], index: 1, kind: input, shape index: {}, may-alias: {1,4}]
  %s2 = inlined_call_operand.hbm [shape: bf16[2,80,128], index: 2, kind: input, shape index: {}]
  %s3 = inlined_call_operand.vmem [shape: bf16[80,128], index: 3, kind: input, shape index: {}]
  %s4 = inlined_call_operand.vmem [shape: f32[4,32], index: 4, kind: output, shape index: {0}, may-alias: {1,4}]
  %s5 = inlined_call_operand.vmem [shape: f32[1,128], index: 5, kind: output, shape index: {1}]
  %6 = xla_tuple %s4, %s5
  %s7 = sld [smem:[#allocation0]]
  $region69: #{lstm_model_forward.1} parent=0
    _
  %s9 = ssub.s32 1, %s7
  %s10 = scalar_select 0, %s9, %s7
  $region1: #{lstm_model_forward.1} parent=0
    #allocation3 [shape = 'u8[40960]{0}', space=vmem, size = 0xa000, scoped, tag = 'input window, operand 2']
    #allocation4 [shape = 's32[2]{0}', space=sflag, size = 0x8, scoped, tag = 'scoped memory for lstm_model_forward.1']
    %11 = vsyncpa [#allocation4], 0
    %s12 = scalar_lea.sflag [#allocation4], 1
    %13 = vsyncpa %s12, 0
    loop: start=0, step=1, limit=4
    $region2: #{lstm_model_forward.1} parent=1 // loop_pre_header
      _
    $region3: #{lstm_model_forward.1} parent=1 // loop_header
      %s15 = sphi 0, %s19
      %p16 = scmp.ge.s32.totalorder %s15, 4
      %s23 = sphi 0, %s23
      %s25 = sphi 0, %s23
      %s26 = sphi 0, %s25
      %s40 = sphi 0, %s26
      %s44 = sphi 0, %s44
      %s46 = sphi 0, %s44
      %s47 = sphi 0, %s46
      %s61 = sphi 0, %s47
      %s67 = sphi 0, %s69
      %s70 = sphi 0, %s67
      %s71 = sphi 0, %s70
      %s87 = sphi 0, %s71
      %s91 = sphi 0, %s91
      %s93 = sphi 0, %s91
      %s94 = sphi 0, %s93
      %s108 = sphi 0, %s94
      %s112 = sphi 0, %s112
      %s114 = sphi 0, %s112
      %s115 = sphi 0, %s114
      %s129 = sphi 0, %s115
      %s133 = sphi 0, %s133
      %s135 = sphi 0, %s133
      %s136 = sphi 0, %s135
      %s150 = sphi 0, %s136
    $region4: #{lstm_model_forward.1} parent=1 // loop_header_branch
      %18 = sbr.rel (%p16) target = $region8
    $region5: #{lstm_model_forward.1} parent=1 // loop_body
      %s20 = ssub.s32 %s15, 1
      %s21 = ssub.s32 %s15, 2
      %s22 = sadd.s32 %s15, 1
      %s24 = sadd.s32 %s23, 1
      %p27 = scmp.eq.s32.totalorder %s15, 1
      %p28 = scmp.ne.s32.totalorder %s23, %s25
      %p29 = scmp.eq.s32.totalorder %s15, 0
      %p30 = por %p28, %p29
      %p31 = scmp.ne.s32.totalorder %s23, %s25
      %p32 = scmp.eq.s32.totalorder %s20, 1
      %p33 = por %p31, %p32
      %p34 = scmp.ne.s32.totalorder %s25, %s26
      %p35 = scmp.eq.s32.totalorder %s20, 0
      %p36 = por %p34, %p35
      %p37 = scmp.ne.s32.totalorder %s25, %s26
      %p38 = scmp.eq.s32.totalorder %s21, 1
      %p39 = por %p37, %p38
      %p41 = scmp.ne.s32.totalorder %s26, %s40
      %p42 = scmp.eq.s32.totalorder %s21, 0
      %p43 = por %p41, %p42
      %s45 = sadd.s32 %s44, 1
      %p48 = scmp.eq.s32.totalorder %s15, 1
      %p49 = scmp.ne.s32.totalorder %s44, %s46
      %p50 = scmp.eq.s32.totalorder %s15, 0
      %p51 = por %p49, %p50
      %p52 = scmp.ne.s32.totalorder %s44, %s46
      %p53 = scmp.eq.s32.totalorder %s20, 1
      %p54 = por %p52, %p53
      %p55 = scmp.ne.s32.totalorder %s46, %s47
      %p56 = scmp.eq.s32.totalorder %s20, 0
      %p57 = por %p55, %p56
      %p58 = scmp.ne.s32.totalorder %s46, %s47
      %p59 = scmp.eq.s32.totalorder %s21, 1
      %p60 = por %p58, %p59
      %p62 = scmp.ne.s32.totalorder %s47, %s61
      %p63 = scmp.eq.s32.totalorder %s21, 0
      %p64 = por %p62, %p63
      %s65 = ssub.s32 %s15, %s22
      %p66 = scmp.eq.s32.totalorder %s65, 0
      %s68 = sadd.s32 %s67, 1
      %s69 = scalar_select %p66, %s67, %s68
      %p72 = pneg %p66
      %p73 = scmp.eq.s32.totalorder %s15, 1
      %p74 = por %p72, %p73
      %p75 = scmp.ne.s32.totalorder %s67, %s70
      %p76 = scmp.eq.s32.totalorder %s15, 0
      %p77 = por %p75, %p76
      %p78 = scmp.ne.s32.totalorder %s67, %s70
      %p79 = scmp.eq.s32.totalorder %s20, 1
      %p80 = por %p78, %p79
      %p81 = scmp.ne.s32.totalorder %s70, %s71
      %p82 = scmp.eq.s32.totalorder %s20, 0
      %p83 = por %p81, %p82
      %p84 = scmp.ne.s32.totalorder %s70, %s71
      %p85 = scmp.eq.s32.totalorder %s21, 1
      %p86 = por %p84, %p85
      %p88 = scmp.ne.s32.totalorder %s71, %s87
      %p89 = scmp.eq.s32.totalorder %s21, 0
      %p90 = por %p88, %p89
      %s92 = sadd.s32 %s91, 1
      %p95 = scmp.eq.s32.totalorder %s15, 1
      %p96 = scmp.ne.s32.totalorder %s91, %s93
      %p97 = scmp.eq.s32.totalorder %s15, 0
      %p98 = por %p96, %p97
      %p99 = scmp.ne.s32.totalorder %s91, %s93
      %p100 = scmp.eq.s32.totalorder %s20, 1
      %p101 = por %p99, %p100
      %p102 = scmp.ne.s32.totalorder %s93, %s94
      %p103 = scmp.eq.s32.totalorder %s20, 0
      %p104 = por %p102, %p103
      %p105 = scmp.ne.s32.totalorder %s93, %s94
      %p106 = scmp.eq.s32.totalorder %s21, 1
      %p107 = por %p105, %p106
      %p109 = scmp.ne.s32.totalorder %s94, %s108
      %p110 = scmp.eq.s32.totalorder %s21, 0
      %p111 = por %p109, %p110
      %s113 = sadd.s32 %s112, 1
      %p116 = scmp.eq.s32.totalorder %s15, 1
      %p117 = scmp.ne.s32.totalorder %s112, %s114
      %p118 = scmp.eq.s32.totalorder %s15, 0
      %p119 = por %p117, %p118
      %p120 = scmp.ne.s32.totalorder %s112, %s114
      %p121 = scmp.eq.s32.totalorder %s20, 1
      %p122 = por %p120, %p121
      %p123 = scmp.ne.s32.totalorder %s114, %s115
      %p124 = scmp.eq.s32.totalorder %s20, 0
      %p125 = por %p123, %p124
      %p126 = scmp.ne.s32.totalorder %s114, %s115
      %p127 = scmp.eq.s32.totalorder %s21, 1
      %p128 = por %p126, %p127
      %p130 = scmp.ne.s32.totalorder %s115, %s129
      %p131 = scmp.eq.s32.totalorder %s21, 0
      %p132 = por %p130, %p131
      %s134 = sadd.s32 %s133, 1
      %p137 = scmp.eq.s32.totalorder %s15, 1
      %p138 = scmp.ne.s32.totalorder %s133, %s135
      %p139 = scmp.eq.s32.totalorder %s15, 0
      %p140 = por %p138, %p139
      %p141 = scmp.ne.s32.totalorder %s133, %s135
      %p142 = scmp.eq.s32.totalorder %s20, 1
      %p143 = por %p141, %p142
      %p144 = scmp.ne.s32.totalorder %s135, %s136
      %p145 = scmp.eq.s32.totalorder %s20, 0
      %p146 = por %p144, %p145
      %p147 = scmp.ne.s32.totalorder %s135, %s136
      %p148 = scmp.eq.s32.totalorder %s21, 1
      %p149 = por %p147, %p148
      %p151 = scmp.ne.s32.totalorder %s136, %s150
      %p152 = scmp.eq.s32.totalorder %s21, 0
      %p153 = por %p151, %p152
      %p154 = scmp.le.s32.totalorder 1, %s15
      %p155 = scmp.lt.s32.totalorder %s15, 3
      %p156 = pnand %p154, %p155
      %p157 = pneg %p156
      // Predicated region
      $region9: #{lstm_model_forward.1} parent=5 // pred_check
        _
      $region10: #{lstm_model_forward.1} parent=5 // pred_check_branch
        %159 = sbr.rel (%p156) target = $region12
      $region11: #{lstm_model_forward.1} parent=5 // pred_region
        %s160 = ssub.s32 %s15, 1
        // Predicated region
        $region13: #{lstm_model_forward.1} parent=11 // pred_check
          %p161 = pneg %p36
        $region14: #{lstm_model_forward.1} parent=11 // pred_check_branch
          %163 = sbr.rel (%p161) target = $region16
        $region15: #{lstm_model_forward.1} parent=11 // pred_region
          _
        $region16: #{lstm_model_forward.1} parent=11 // pred_fallthru
          _
        // Predicated region
        $region17: #{lstm_model_forward.1} parent=11 // pred_check
          %p164 = pneg %p57
        $region18: #{lstm_model_forward.1} parent=11 // pred_check_branch
          %166 = sbr.rel (%p164) target = $region20
        $region19: #{lstm_model_forward.1} parent=11 // pred_region
          _
        $region20: #{lstm_model_forward.1} parent=11 // pred_fallthru
          _
        // Predicated region
        $region21: #{lstm_model_forward.1} parent=11 // pred_check
          %p167 = pneg %p104
        $region22: #{lstm_model_forward.1} parent=11 // pred_check_branch
          %169 = sbr.rel (%p167) target = $region24
        $region23: #{lstm_model_forward.1} parent=11 // pred_region
          _
        $region24: #{lstm_model_forward.1} parent=11 // pred_fallthru
          _
      $region12: #{lstm_model_forward.1} parent=5 // pred_fallthru
        _
      %p170 = scmp.lt.s32.totalorder %s15, 2
      // Predicated region
      $region25: #{lstm_model_forward.1} parent=5 // pred_check
        %p171 = pneg %p170
      $region26: #{lstm_model_forward.1} parent=5 // pred_check_branch
        %173 = sbr.rel (%p171) target = $region28
      $region27: #{lstm_model_forward.1} parent=5 // pred_region
        // Predicated region
        $region29: #{lstm_model_forward.1} parent=27 // pred_check
          %p174 = pneg %p77
        $region30: #{lstm_model_forward.1} parent=27 // pred_check_branch
          %176 = sbr.rel (%p174) target = $region32
        $region31: #{lstm_model_forward.1} parent=27 // pred_region
          %s177 = sand.u32 %s67, 1
          %s178 = scalar_lea.sflag [#allocation4], %s177
          %s179 = sand.u32 %s67, 1
          %s180 = smul.addr %s179, 40
          %s181 = scalar_lea.vmem [#allocation3], %s180
          %s183 = ssub.s32 640, 640
          %184 = vsyncadd %s178, %s183
          %s185 = smul.addr %s15, 10
          %s186 = smul.addr %s185, 64
          %s187 = scalar_lea.hbm %s2, %s186
          %s188 = sshll.u32 %s181, 4
          %s189 = int_to_ptr.vmem [resolvable:$true] %s188
          %194 = dma.hbm_to_vmem [thread:$0]  %s187, 640, %s189, %s178, 64, 64, 4
        $region32: #{lstm_model_forward.1} parent=27 // pred_fallthru
          _
      $region28: #{lstm_model_forward.1} parent=5 // pred_fallthru
        _
      %p195 = scmp.le.s32.totalorder 1, %s15
      %p196 = scmp.lt.s32.totalorder %s15, 3
      %p197 = pnand %p195, %p196
      %p198 = pneg %p197
      // Predicated region
      $region33: #{lstm_model_forward.1} parent=5 // pred_check
        _
      $region34: #{lstm_model_forward.1} parent=5 // pred_check_branch
        %200 = sbr.rel (%p197) target = $region36
      $region35: #{lstm_model_forward.1} parent=5 // pred_region
        %s201 = ssub.s32 %s15, 1
        %s202 = sand.u32 %s70, 1
        %s203 = scalar_lea.sflag [#allocation4], %s202
        %s204 = sand.u32 %s70, 1
        %s205 = smul.addr %s204, 40
        %s206 = scalar_lea.vmem [#allocation3], %s205
        // Predicated region
        $region37: #{lstm_model_forward.1} parent=35 // pred_check
          %p207 = pneg %p83
        $region38: #{lstm_model_forward.1} parent=35 // pred_check_branch
          %209 = sbr.rel (%p207) target = $region40
        $region39: #{lstm_model_forward.1} parent=35 // pred_region
          %210 = dma.done %s203, 640
        $region40: #{lstm_model_forward.1} parent=35 // pred_fallthru
          _
        %p211 = pneg %p36
        %p212 = pneg %p33
        %p213 = pneg %p57
        %p214 = pneg %p54
        %s215 = sand.u32 %s70, 1
        %s216 = scalar_lea.sflag [#allocation4], %s215
        %s217 = sand.u32 %s70, 1
        %s218 = smul.addr %s217, 40
        %s219 = scalar_lea.vmem [#allocation3], %s218
        %p220 = pneg %p83
        %p221 = pneg %p80
        %p222 = pneg %p104
        %p223 = pneg %p101
        %p224 = pneg %p125
        %p225 = pneg %p122
        %p226 = pneg %p146
        %p227 = pneg %p143
        %p229 = scmp.eq.s32.totalorder %s20, 0
        // Predicated region
        $region41: #{lstm_model_forward.1} parent=35 // pred_check
          %p230 = pneg %p229
        $region42: #{lstm_model_forward.1} parent=35 // pred_check_branch
          %232 = sbr.rel (%p230) target = $region44
        $region43: #{lstm_model_forward.1} parent=35 // pred_region
          %v233 = vlaneseq
          %v234 = vand.u32 %v233, 127
          %vm235 = vcmp.eq.s32.totalorder %v234, 64
          %v236 = vsel %vm235, 1, 0
          %v237 = vcvt.s32.f32 %v236
          %vm238 = vcmask 647168
          %239 = vst.msk [vmem:[#allocation2] sm:$0x1] %vm238, %v237
          %v240 = vld [vmem:[%s0] sm:$0x1]
          %vm241 = vcmask 253952
          %242 = vst.msk [vmem:[#allocation2] sm:$0x1] %vm241, %v240
        $region44: #{lstm_model_forward.1} parent=35 // pred_fallthru
          _
        %s243 = scalar_lea.vmem %s1, %s20
        %v244 = vld [vmem:[%s243] sm:$0x1]
        %s245 = sadd.s32 %s20, 2
        %s246 = scalar_lea.vmem %s1, %s245
        %v247 = vld [vmem:[%s246] sm:$0x1]
        %249 = vrot.lane.b32.xlu0 %v244, 32
        %v250 = vpop.permute.xlu0 %249
        %vm252 = vcmask 516352
        %253 = vst.msk [vmem:[#allocation2] sm:$0x1] %vm252, %v250
        %v254 = vld [vmem:[#allocation2] sm:$0x1]
        %v255 = vpack.c.bf16 %v254, %v254
        %v256 = vld [vmem:[%s206] sm:$0xf]
        %v257 = vld [vmem:[%s206 + $0x4] sm:$0xf]
        %v258 = vld [vmem:[%s206 + $0x8] sm:$0xf]
        %v259 = vld [vmem:[%s206 + $0xc] sm:$0xf]
        %v260 = vld [vmem:[%s206 + $0x10] sm:$0xf]
        %v261 = vld [vmem:[%s206 + $0x14] sm:$0xf]
        %v262 = vld [vmem:[%s206 + $0x18] sm:$0xf]
        %v263 = vld [vmem:[%s206 + $0x1c] sm:$0xf]
        %v264 = vld [vmem:[%s206 + $0x20] sm:$0xf]
        %v265 = vld [vmem:[%s206 + $0x24] sm:$0xf]
        %v276 = vunpack.c.l.b16 %v256
        %v277 = vunpack.c.l.b16 %v257
        %v278 = vunpack.c.l.b16 %v258
        %v279 = vunpack.c.l.b16 %v259
        %v280 = vunpack.c.l.b16 %v260
        %v281 = vunpack.c.l.b16 %v261
        %v282 = vunpack.c.l.b16 %v262
        %v283 = vunpack.c.l.b16 %v263
        %v284 = vunpack.c.l.b16 %v264
        %v285 = vunpack.c.l.b16 %v265
        %v286 = vpack.c.b16 %v277, %v276
        %v287 = vpack.c.b16 %v279, %v278
        %v288 = vpack.c.b16 %v281, %v280
        %v289 = vpack.c.b16 %v283, %v282
        %v290 = vpack.c.b16 %v285, %v284
        %vm296 = vcmask 654336
        %v298 = vsel %vm296, %v255, 0
        %300 = vmatprep.subr.bf16.mxu0 0
        %301 = vmatpush1.bf16.msra.mxu0 %v286
        %302 = vmatprep.subr.bf16.mxu0 0
        %303 = vmatpush1.bf16.msra.mxu0 %v287
        %304 = vmatprep.subr.bf16.mxu0 0
        %305 = vmatpush1.bf16.msra.mxu0 %v288
        %306 = vmatprep.subr.bf16.mxu0 0
        %307 = vmatpush1.bf16.msra.mxu0 %v289
        %308 = vmatprep.subr.bf16.mxu0 0
        %309 = vmatpush1.bf16.msra.mxu0 %v290
        %310 = vmatprep.subr.bf16.mxu0 0
        %311 = vmatpush1.bf16.msra.mxu0 0
        %312 = vmatprep.subr.bf16.mxu0 0
        %313 = vmatpush1.bf16.msra.mxu0 0
        %314 = vmatprep.subr.bf16.mxu0 0
        %315 = vmatpush1.bf16.msra.mxu0 0
        %316 = vmatprep.subr.bf16.mxu0 0
        %317 = vmatpush1.bf16.msra.mxu0 0
        %318 = vmatprep.subr.bf16.mxu0 0
        %319 = vmatpush1.bf16.msra.mxu0 0
        %320 = vmatprep.subr.bf16.mxu0 0
        %321 = vmatpush1.bf16.msra.mxu0 0
        %322 = vmatprep.subr.bf16.mxu0 0
        %323 = vmatpush1.bf16.msra.mxu0 0
        %324 = vmatprep.subr.bf16.mxu0 0
        %325 = vmatpush1.bf16.msra.mxu0 0
        %326 = vmatprep.subr.bf16.mxu0 0
        %327 = vmatpush1.bf16.msra.mxu0 0
        %328 = vmatprep.subr.bf16.mxu0 0
        %329 = vmatpush1.bf16.msra.mxu0 0
        %330 = vmatprep.subr.bf16.mxu0 0
        %331 = vmatpush1.bf16.msra.mxu0 0
        %332 = vmatprep.mubr.bf16.mxu0 0
        %333 = vmatmul.mubr.bf16.gmra.mrb[0].mxu0 %v298
        %v334 = vpop.f32.mrb[0].mxu0
        %v335 = vadd.f32 0.0, %v334
        %v336 = vpop.f32.mrb[0].mxu0
        %v337 = vpop.f32.mrb[0].mxu0
        %v338 = vpop.f32.mrb[0].mxu0
        %339 = vdwg.mxu0
        %v340 = vxor.u32 %v335, 2147483648
        %v341 = vmul.f32 %v340, 1.442695
        %v342 = vpow.pop %v341
        %v343 = vadd.f32 %v342, 1.0
        %v344 = vrcp.pop %v343
        %v345 = vmul.f32 1.0, %v344
        %v346 = vtanh.pop %v335
        %348 = vrot.lane.b32.xlu0 %v247, 32
        %v349 = vpop.permute.xlu0 %348
        %v351 = vmul.f32 %v345, %v349
        %353 = vrot.lane.b32.xlu0 %v346, 32
        %v354 = vpop.permute.xlu0 %353
        %v356 = vmul.f32 %v345, %v354
        %358 = vrot.lane.b32.xlu0 %v356, 32
        %v359 = vpop.permute.xlu0 %358
        %v361 = vadd.f32 %v351, %v359
        %v362 = vtanh.pop %v361
        %364 = vrot.lane.b32.xlu0 %v362, 32
        %v365 = vpop.permute.xlu0 %364
        %v367 = vmul.f32 %v345, %v365
        %369 = vrot.lane.b32.xlu0 %v367, 64
        %v370 = vpop.permute.xlu0 %369
        %s372 = scalar_lea.vmem %s4, %s20
        %vm373 = vcmask 253952
        %374 = vst.msk [vmem:[%s372] sm:$0x1] %vm373, %v370
        %376 = vrot.lane.b32.xlu0 %v361, 96
        %v377 = vpop.permute.xlu0 %376
        %s379 = scalar_lea.vmem %s4, %s245
        %380 = vst.msk [vmem:[%s379] sm:$0x1] %vm373, %v377
        %381 = vst.msk [vmem:[#allocation2] sm:$0x1] %vm373, %v370
        %p382 = scmp.eq.s32.totalorder %s20, 1
        // Predicated region
        $region45: #{lstm_model_forward.1} parent=35 // pred_check
          %p383 = pneg %p382
        $region46: #{lstm_model_forward.1} parent=35 // pred_check_branch
          %385 = sbr.rel (%p383) target = $region48
        $region47: #{lstm_model_forward.1} parent=35 // pred_region
          %v386 = vld [vmem:[#allocation2] sm:$0x1]
          %v387 = vpack.c.bf16 %v386, %v386
          %v388 = vld [vmem:[%s3] sm:$0xf]
          %v389 = vld [vmem:[%s3 + $0x4] sm:$0xf]
          %v390 = vld [vmem:[%s3 + $0x8] sm:$0xf]
          %v391 = vld [vmem:[%s3 + $0xc] sm:$0xf]
          %v392 = vld [vmem:[%s3 + $0x10] sm:$0xf]
          %v393 = vld [vmem:[%s3 + $0x14] sm:$0xf]
          %v394 = vld [vmem:[%s3 + $0x18] sm:$0xf]
          %v395 = vld [vmem:[%s3 + $0x1c] sm:$0xf]
          %v396 = vld [vmem:[%s3 + $0x20] sm:$0xf]
          %v397 = vld [vmem:[%s3 + $0x24] sm:$0xf]
          %v408 = vunpack.c.l.b16 %v388
          %v409 = vunpack.c.l.b16 %v389
          %v410 = vunpack.c.l.b16 %v390
          %v411 = vunpack.c.l.b16 %v391
          %v412 = vunpack.c.l.b16 %v392
          %v413 = vunpack.c.l.b16 %v393
          %v414 = vunpack.c.l.b16 %v394
          %v415 = vunpack.c.l.b16 %v395
          %v416 = vunpack.c.l.b16 %v396
          %v417 = vunpack.c.l.b16 %v397
          %v418 = vpack.c.b16 %v409, %v408
          %v419 = vpack.c.b16 %v411, %v410
          %v420 = vpack.c.b16 %v413, %v412
          %v421 = vpack.c.b16 %v415, %v414
          %v422 = vpack.c.b16 %v417, %v416
          %v429 = vsel %vm296, %v387, 0
          %431 = vmatprep.subr.bf16.mxu0 0
          %432 = vmatpush1.bf16.msra.mxu0 %v418
          %433 = vmatprep.subr.bf16.mxu0 0
          %434 = vmatpush1.bf16.msra.mxu0 %v419
          %435 = vmatprep.subr.bf16.mxu0 0
          %436 = vmatpush1.bf16.msra.mxu0 %v420
          %437 = vmatprep.subr.bf16.mxu0 0
          %438 = vmatpush1.bf16.msra.mxu0 %v421
          %439 = vmatprep.subr.bf16.mxu0 0
          %440 = vmatpush1.bf16.msra.mxu0 %v422
          %441 = vmatprep.subr.bf16.mxu0 0
          %442 = vmatpush1.bf16.msra.mxu0 0
          %443 = vmatprep.subr.bf16.mxu0 0
          %444 = vmatpush1.bf16.msra.mxu0 0
          %445 = vmatprep.subr.bf16.mxu0 0
          %446 = vmatpush1.bf16.msra.mxu0 0
          %447 = vmatprep.subr.bf16.mxu0 0
          %448 = vmatpush1.bf16.msra.mxu0 0
          %449 = vmatprep.subr.bf16.mxu0 0
          %450 = vmatpush1.bf16.msra.mxu0 0
          %451 = vmatprep.subr.bf16.mxu0 0
          %452 = vmatpush1.bf16.msra.mxu0 0
          %453 = vmatprep.subr.bf16.mxu0 0
          %454 = vmatpush1.bf16.msra.mxu0 0
          %455 = vmatprep.subr.bf16.mxu0 0
          %456 = vmatpush1.bf16.msra.mxu0 0
          %457 = vmatprep.subr.bf16.mxu0 0
          %458 = vmatpush1.bf16.msra.mxu0 0
          %459 = vmatprep.subr.bf16.mxu0 0
          %460 = vmatpush1.bf16.msra.mxu0 0
          %461 = vmatprep.subr.bf16.mxu0 0
          %462 = vmatpush1.bf16.msra.mxu0 0
          %463 = vmatprep.mubr.bf16.mxu0 0
          %464 = vmatmul.mubr.bf16.gmra.mrb[0].mxu0 %v429
          %v465 = vpop.f32.mrb[0].mxu0
          %v466 = vadd.f32 0.0, %v465
          %v467 = vpop.f32.mrb[0].mxu0
          %v468 = vpop.f32.mrb[0].mxu0
          %v469 = vpop.f32.mrb[0].mxu0
          %470 = vdwg.mxu0
          %471 = vst [vmem:[%s5] sm:$0x1] %v466
        $region48: #{lstm_model_forward.1} parent=35 // pred_fallthru
          _
        // Predicated region
        $region49: #{lstm_model_forward.1} parent=35 // pred_check
          %p472 = pneg %p122
        $region50: #{lstm_model_forward.1} parent=35 // pred_check_branch
          %474 = sbr.rel (%p472) target = $region52
        $region51: #{lstm_model_forward.1} parent=35 // pred_region
          _
        $region52: #{lstm_model_forward.1} parent=35 // pred_fallthru
          _
        // Predicated region
        $region53: #{lstm_model_forward.1} parent=35 // pred_check
          %p475 = pneg %p143
        $region54: #{lstm_model_forward.1} parent=35 // pred_check_branch
          %477 = sbr.rel (%p475) target = $region56
        $region55: #{lstm_model_forward.1} parent=35 // pred_region
          _
        $region56: #{lstm_model_forward.1} parent=35 // pred_fallthru
          _
        // Predicated region
        $region57: #{lstm_model_forward.1} parent=35 // pred_check
          %p478 = pneg %p122
        $region58: #{lstm_model_forward.1} parent=35 // pred_check_branch
          %480 = sbr.rel (%p478) target = $region60
        $region59: #{lstm_model_forward.1} parent=35 // pred_region
          _
        $region60: #{lstm_model_forward.1} parent=35 // pred_fallthru
          _
        // Predicated region
        $region61: #{lstm_model_forward.1} parent=35 // pred_check
          %p481 = pneg %p143
        $region62: #{lstm_model_forward.1} parent=35 // pred_check_branch
          %483 = sbr.rel (%p481) target = $region64
        $region63: #{lstm_model_forward.1} parent=35 // pred_region
          _
        $region64: #{lstm_model_forward.1} parent=35 // pred_fallthru
          _
      $region36: #{lstm_model_forward.1} parent=5 // pred_fallthru
        _
      %p484 = scmp.le.s32.totalorder 2, %s15
      // Predicated region
      $region65: #{lstm_model_forward.1} parent=5 // pred_check
        %p485 = pneg %p484
      $region66: #{lstm_model_forward.1} parent=5 // pred_check_branch
        %487 = sbr.rel (%p485) target = $region68
      $region67: #{lstm_model_forward.1} parent=5 // pred_region
        %s488 = ssub.s32 %s15, 2
      $region68: #{lstm_model_forward.1} parent=5 // pred_fallthru
        _
    $region6: #{lstm_model_forward.1} parent=1 // loop_footer
      %s19 = sadd.s32 1, %s15
    $region7: #{lstm_model_forward.1} parent=1 // loop_footer_branch
      %14 = sbr.rel target = $region3
    $region8: #{lstm_model_forward.1} parent=1 // loop_exit
      _
    %489 = vsyncpa [#allocation4], 1
    %s490 = scalar_lea.sflag [#allocation4], 1
    %491 = vsyncpa %s490, 1

</llo_original>
